<compile_context>
chip_gen: v6e
topology: v6e:2x2x1
jax: 0.10.0
libtpu: 0.0.40
codegen_flags: <defaults>
</compile_context>

<pallas_src>
import functools
import math

import jax
import jax.numpy as jnp
from jax.experimental import pallas as pl
from jax.experimental.pallas import tpu as pltpu


# ---------------------------------------------------------------------------
# Kernels
# ---------------------------------------------------------------------------

def _linear_kernel(x_ref, w_ref, b_ref, o_ref, *, activation):
    """o = act(x @ w + b) for one (tile_m, K) x (K, tile_n) block."""
    acc = jnp.dot(x_ref[...].astype(jnp.float32),
                  w_ref[...].astype(jnp.float32),
                  preferred_element_type=jnp.float32)
    acc = acc + b_ref[...].astype(jnp.float32)
    if activation == "gelu":
        # BERT-pytorch GELU: 0.5*x*(1+tanh(sqrt(2/pi)*(x+0.044715*x^3)))
        c = math.sqrt(2.0 / math.pi)
        acc = 0.5 * acc * (1.0 + jnp.tanh(c * (acc + 0.044715 * acc * acc * acc)))
    o_ref[...] = acc.astype(o_ref.dtype)


def _attn_kernel(q_ref, k_ref, v_ref, m_ref, o_ref, *, scale):
    """Masked softmax(q k^T / sqrt(dk)) v for one (batch, head) slice."""
    q = q_ref[0].astype(jnp.float32)           # (S, dk)
    k = k_ref[0].astype(jnp.float32)           # (S, dk)
    v = v_ref[0].astype(jnp.float32)           # (S, dk)
    m = m_ref[0]                               # (S, S) float mask (1 = keep)
    s = jax.lax.dot_general(q, k, (((1,), (1,)), ((), ())),
                            preferred_element_type=jnp.float32) * scale
    s = jnp.where(m == 0.0, jnp.float32(-1e9), s)
    s = s - jnp.max(s, axis=-1, keepdims=True)
    p = jnp.exp(s)
    p = p * pl.reciprocal(jnp.sum(p, axis=-1, keepdims=True), approx=False)
    o = jnp.dot(p, v, preferred_element_type=jnp.float32)
    o_ref[0] = o.astype(o_ref.dtype)


def _add_ln_kernel(x_ref, r_ref, w_ref, b_ref, o_ref, *, eps, features):
    """BERT ResidualConnection: LayerNorm(x + residual), unbiased std, eps on std."""
    x = x_ref[...].astype(jnp.float32) + r_ref[...].astype(jnp.float32)
    mean = jnp.mean(x, axis=-1, keepdims=True)
    d = x - mean
    var = jnp.sum(d * d, axis=-1, keepdims=True) * jnp.float32(1.0 / (features - 1))
    inv = pl.reciprocal(jnp.sqrt(var) + jnp.float32(eps), approx=False)
    y = w_ref[...].astype(jnp.float32) * (d * inv) + b_ref[...].astype(jnp.float32)
    o_ref[...] = y.astype(o_ref.dtype)


def _log_softmax_kernel(x_ref, o_ref):
    x = x_ref[...].astype(jnp.float32)
    s = x - jnp.max(x, axis=-1, keepdims=True)
    lse = jnp.log(jnp.sum(jnp.exp(s), axis=-1, keepdims=True))
    o_ref[...] = (s - lse).astype(o_ref.dtype)


# ---------------------------------------------------------------------------
# Wrappers (pallas_call + BlockSpecs)
# ---------------------------------------------------------------------------

def _row_tile(rows, feat, max_rows=512, vmem_budget=2 << 20):
    """Pick a row-tile: full extent if small, else big (multiple of 8), capped
    so one f32 buffer stays ~<=2 MiB (keeps double-buffered blocks well inside
    the default scoped VMEM even on v7x's 64 MiB)."""
    if rows <= max_rows:
        return rows
    by_budget = (vmem_budget // (4 * feat)) // 8 * 8
    return int(max(8, min(max_rows, by_budget)))


def linear(x2, w, b, *, activation=None, tn_max=512):
    """x2: (M, K), w: (K, N), b: (N,) -> (M, N)."""
    M, K = x2.shape
    N = w.shape[1]
    tm = _row_tile(M, K)
    tn = N if N <= tn_max else tn_max
    grid = (pl.cdiv(M, tm), pl.cdiv(N, tn))
    kernel = functools.partial(_linear_kernel, activation=activation)
    cost = pl.CostEstimate(
        flops=int(2 * M * K * N),
        transcendentals=int(M * N if activation == "gelu" else 0),
        bytes_accessed=int(4 * (M * K + K * N + M * N + N)))
    return pl.pallas_call(
        kernel,
        out_shape=jax.ShapeDtypeStruct((M, N), x2.dtype),
        grid=grid,
        in_specs=[
            pl.BlockSpec((tm, K), lambda i, j: (i, 0)),
            pl.BlockSpec((K, tn), lambda i, j: (0, j)),
            pl.BlockSpec((1, tn), lambda i, j: (0, j)),
        ],
        out_specs=pl.BlockSpec((tm, tn), lambda i, j: (i, j)),
        compiler_params=pltpu.CompilerParams(
            dimension_semantics=("parallel", "parallel")),
        cost_estimate=cost,
    )(x2, w, b.reshape(1, N))


def attention(qh, kh, vh, maskf, heads):
    """qh/kh/vh: (B*H, S, dk); maskf: (B, S, S) float (1=keep)."""
    BH, S, dk = qh.shape
    scale = 1.0 / math.sqrt(dk)
    kernel = functools.partial(_attn_kernel, scale=scale)
    cost = pl.CostEstimate(
        flops=int(BH * (4 * S * S * dk + 6 * S * S)),
        transcendentals=int(BH * (S * S + S)),
        bytes_accessed=int(4 * (4 * BH * S * dk + (BH // heads) * S * S)))
    return pl.pallas_call(
        kernel,
        out_shape=jax.ShapeDtypeStruct((BH, S, dk), qh.dtype),
        grid=(BH,),
        in_specs=[
            pl.BlockSpec((1, S, dk), lambda i: (i, 0, 0)),
            pl.BlockSpec((1, S, dk), lambda i: (i, 0, 0)),
            pl.BlockSpec((1, S, dk), lambda i: (i, 0, 0)),
            pl.BlockSpec((1, S, S), lambda i: (i // heads, 0, 0)),
        ],
        out_specs=pl.BlockSpec((1, S, dk), lambda i: (i, 0, 0)),
        compiler_params=pltpu.CompilerParams(dimension_semantics=("parallel",)),
        cost_estimate=cost,
    )(qh, kh, vh, maskf)


def add_layernorm(x2, r2, w, b, eps):
    """LayerNorm(x2 + r2) with BERT-pytorch semantics. x2, r2: (rows, F)."""
    rows, F = x2.shape
    tr = _row_tile(rows, F)
    kernel = functools.partial(_add_ln_kernel, eps=float(eps), features=F)
    cost = pl.CostEstimate(
        flops=int(10 * rows * F),
        transcendentals=int(2 * rows),
        bytes_accessed=int(4 * (3 * rows * F + 2 * F)))
    return pl.pallas_call(
        kernel,
        out_shape=jax.ShapeDtypeStruct((rows, F), x2.dtype),
        grid=(pl.cdiv(rows, tr),),
        in_specs=[
            pl.BlockSpec((tr, F), lambda i: (i, 0)),
            pl.BlockSpec((tr, F), lambda i: (i, 0)),
            pl.BlockSpec((1, F), lambda i: (0, 0)),
            pl.BlockSpec((1, F), lambda i: (0, 0)),
        ],
        out_specs=pl.BlockSpec((tr, F), lambda i: (i, 0)),
        compiler_params=pltpu.CompilerParams(dimension_semantics=("parallel",)),
        cost_estimate=cost,
    )(x2, r2, w.reshape(1, F), b.reshape(1, F))


def log_softmax(x2):
    """Row-wise log-softmax. x2: (rows, F)."""
    rows, F = x2.shape
    tr = _row_tile(rows, F)
    cost = pl.CostEstimate(
        flops=int(5 * rows * F),
        transcendentals=int(rows * F + rows),
        bytes_accessed=int(4 * 2 * rows * F))
    return pl.pallas_call(
        _log_softmax_kernel,
        out_shape=jax.ShapeDtypeStruct((rows, F), x2.dtype),
        grid=(pl.cdiv(rows, tr),),
        in_specs=[pl.BlockSpec((tr, F), lambda i: (i, 0))],
        out_specs=pl.BlockSpec((tr, F), lambda i: (i, 0)),
        compiler_params=pltpu.CompilerParams(dimension_semantics=("parallel",)),
        cost_estimate=cost,
    )(x2)


# ---------------------------------------------------------------------------
# BERTLM forward (Pallas) and parameter init
# ---------------------------------------------------------------------------

def bert_lm_forward(params, ids, seg, *, heads, eps=1e-6):
    B, S = ids.shape
    hidden = params["tok_emb"].shape[1]
    dk = hidden // heads

    # Embedding = token + positional + segment.
    # TODO(synk): embedding-table gathers stay in XLA (jnp.take); a DMA-gather
    # Pallas kernel is not worth it for a plain row lookup.
    x = (jnp.take(params["tok_emb"], ids, axis=0)
         + params["pe"][:S][None, :, :]
         + jnp.take(params["seg_emb"], seg, axis=0))
    # All nn.Dropout layers are identity in inference mode.

    maskf = jnp.broadcast_to((ids > 0).astype(jnp.float32)[:, None, :], (B, S, S))
    x2 = x.reshape(B * S, hidden)

    def split_heads(t):
        return t.reshape(B, S, heads, dk).transpose(0, 2, 1, 3).reshape(B * heads, S, dk)

    for L in params["layers"]:
        # Multi-headed self attention
        q = linear(x2, L["wq"], L["bq"])
        k = linear(x2, L["wk"], L["bk"])
        v = linear(x2, L["wv"], L["bv"])
        a = attention(split_heads(q), split_heads(k), split_heads(v), maskf, heads)
        a = a.reshape(B, heads, S, dk).transpose(0, 2, 1, 3).reshape(B * S, hidden)
        a = linear(a, L["wo"], L["bo"])
        x2 = add_layernorm(x2, a, L["ln1_w"], L["ln1_b"], eps)
        # Position-wise feed forward (GELU fused into the first matmul)
        h = linear(x2, L["w1"], L["b1"], activation="gelu")
        h = linear(h, L["w2"], L["b2"])
        x2 = add_layernorm(x2, h, L["ln2_w"], L["ln2_b"], eps)

    # Masked-LM head: log-softmax over vocab for every position.
    mlm = log_softmax(linear(x2, params["mlm_w"], params["mlm_b"])).reshape(B, S, -1)
    # Next-sentence head: log-softmax over 2 classes for the [CLS] position.
    cls = x2.reshape(B, S, hidden)[:, 0, :]
    nsp = log_softmax(linear(cls, params["nsp_w"], params["nsp_b"]))
    return nsp, mlm


def _dense_init(key, fan_in, fan_out, w_scale=0.05, b_scale=0.02):
    kw, kb = jax.random.split(key)
    w = w_scale * jax.random.normal(kw, (fan_in, fan_out), jnp.float32)
    b = b_scale * jax.random.normal(kb, (fan_out,), jnp.float32)
    return w, b


def init_params(key, *, vocab, hidden, n_layers, max_len=512):
    d_ff = 4 * hidden
    ks = jax.random.split(key, 5 + n_layers)

    tok = 0.1 * jax.random.normal(ks[0], (vocab, hidden), jnp.float32)
    tok = tok.at[0].set(0.0)                      # padding_idx=0
    segm = 0.1 * jax.random.normal(ks[1], (3, hidden), jnp.float32)
    segm = segm.at[0].set(0.0)                    # padding_idx=0

    # Sinusoidal positional table (matches PositionalEmbedding).
    position = jnp.arange(max_len, dtype=jnp.float32)[:, None]
    div_term = jnp.exp(jnp.arange(0, hidden, 2, dtype=jnp.float32)
                       * (-(math.log(10000.0) / hidden)))
    pe = jnp.zeros((max_len, hidden), jnp.float32)
    pe = pe.at[:, 0::2].set(jnp.sin(position * div_term))
    pe = pe.at[:, 1::2].set(jnp.cos(position * div_term))

    layers = []
    for li in range(n_layers):
        lk = jax.random.split(ks[2 + li], 6)
        wq, bq = _dense_init(lk[0], hidden, hidden)
        wk, bk = _dense_init(lk[1], hidden, hidden)
        wv, bv = _dense_init(lk[2], hidden, hidden)
        wo, bo = _dense_init(lk[3], hidden, hidden)
        w1, b1 = _dense_init(lk[4], hidden, d_ff)
        w2, b2 = _dense_init(lk[5], d_ff, hidden)
        layers.append(dict(
            wq=wq, bq=bq, wk=wk, bk=bk, wv=wv, bv=bv, wo=wo, bo=bo,
            ln1_w=jnp.ones((hidden,), jnp.float32), ln1_b=jnp.zeros((hidden,), jnp.float32),
            w1=w1, b1=b1, w2=w2, b2=b2,
            ln2_w=jnp.ones((hidden,), jnp.float32), ln2_b=jnp.zeros((hidden,), jnp.float32)))

    mlm_w, mlm_b = _dense_init(ks[2 + n_layers], hidden, vocab)
    nsp_w, nsp_b = _dense_init(ks[3 + n_layers], hidden, 2)
    return dict(tok_emb=tok, seg_emb=segm, pe=pe, layers=layers,
                mlm_w=mlm_w, mlm_b=mlm_b, nsp_w=nsp_w, nsp_b=nsp_b)


# ---------------------------------------------------------------------------
# Pure-JAX reference with identical semantics (for verification)
# ---------------------------------------------------------------------------

def reference_forward(params, ids, seg, *, heads, eps=1e-6):
    B, S = ids.shape
    hidden = params["tok_emb"].shape[1]
    dk = hidden // heads

    def ln(x, w, b):
        mean = jnp.mean(x, -1, keepdims=True)
        d = x - mean
        std = jnp.sqrt(jnp.sum(d * d, -1, keepdims=True) / (x.shape[-1] - 1))
        return w * d / (std + eps) + b

    def gelu(h):
        return 0.5 * h * (1.0 + jnp.tanh(math.sqrt(2.0 / math.pi)
                                         * (h + 0.044715 * h ** 3)))

    x = (jnp.take(params["tok_emb"], ids, axis=0)
         + params["pe"][:S][None, :, :]
         + jnp.take(params["seg_emb"], seg, axis=0))
    mask = (ids > 0).astype(jnp.float32)[:, None, None, :]   # (B,1,1,S)

    for L in params["layers"]:
        q = (x @ L["wq"] + L["bq"]).reshape(B, S, heads, dk).transpose(0, 2, 1, 3)
        k = (x @ L["wk"] + L["bk"]).reshape(B, S, heads, dk).transpose(0, 2, 1, 3)
        v = (x @ L["wv"] + L["bv"]).reshape(B, S, heads, dk).transpose(0, 2, 1, 3)
        s = jnp.einsum("bhqd,bhkd->bhqk", q, k) / math.sqrt(dk)
        s = jnp.where(mask == 0.0, -1e9, s)
        p = jax.nn.softmax(s, axis=-1)
        a = jnp.einsum("bhqk,bhkd->bhqd", p, v).transpose(0, 2, 1, 3).reshape(B, S, hidden)
        a = a @ L["wo"] + L["bo"]
        x = ln(x + a, L["ln1_w"], L["ln1_b"])
        h = gelu(x @ L["w1"] + L["b1"])
        h = h @ L["w2"] + L["b2"]
        x = ln(x + h, L["ln2_w"], L["ln2_b"])

    mlm = jax.nn.log_softmax(x @ params["mlm_w"] + params["mlm_b"], axis=-1)
    nsp = jax.nn.log_softmax(x[:, 0] @ params["nsp_w"] + params["nsp_b"], axis=-1)
    return nsp, mlm


# ---------------------------------------------------------------------------
# Main
# ---------------------------------------------------------------------------

if __name__ == "__main__":
    batch, seq, hidden, heads, n_layers, vocab = 2, 8, 32, 2, 2, 64
    eps = 1e-6

    key = jax.random.PRNGKey(0)
    kp, kid, kseg = jax.random.split(key, 3)
    params = init_params(kp, vocab=vocab, hidden=hidden, n_layers=n_layers)

    ids = jax.random.randint(kid, (batch, seq), 1, vocab)
    ids = ids.at[:, -1].set(0)                       # include a padding token (exercises mask)
    seg = jax.random.randint(kseg, (batch, seq), 1, 3)
    seg = jnp.where(ids > 0, seg, 0)

    nsp, mlm = bert_lm_forward(params, ids, seg, heads=heads, eps=eps)
    nsp = jax.block_until_ready(nsp)
    mlm = jax.block_until_ready(mlm)

    nsp_ref, mlm_ref = reference_forward(params, ids, seg, heads=heads, eps=eps)
    assert nsp.shape == (batch, 2) and mlm.shape == (batch, seq, vocab)
    assert bool(jnp.all(jnp.isfinite(nsp))) and bool(jnp.all(jnp.isfinite(mlm)))
    assert jnp.allclose(nsp, nsp_ref, atol=3e-2, rtol=3e-2), "NSP mismatch vs reference"
    assert jnp.allclose(mlm, mlm_ref, atol=3e-2, rtol=3e-2), "MLM mismatch vs reference"

    print("KERNEL_OK")
</pallas_src>

<mosaic_0001>
module attributes {stable_mosaic.version = 11 : i64} {
  func.func @_linear_kernel(%arg0: i32, %arg1: i32, %arg2: memref<16x32xf32, #tpu.memory_space<vmem>>, %arg3: memref<32x32xf32, #tpu.memory_space<vmem>>, %arg4: memref<1x32xf32, #tpu.memory_space<vmem>>, %arg5: memref<16x32xf32, #tpu.memory_space<vmem>>) attributes {dimension_semantics = [#tpu.dimension_semantics<parallel>, #tpu.dimension_semantics<parallel>], iteration_bounds = array<i64: 1, 1>, scalar_prefetch = 0 : i64, scratch_operands = 0 : i64, tpu.core_type = #tpu.core_type<tc>, window_params = [{transform_indices = @transform_0, window_bounds = array<i64: 16, 32>}, {transform_indices = @transform_1, window_bounds = array<i64: 32, 32>}, {transform_indices = @transform_2, window_bounds = array<i64: 1, 32>}, {transform_indices = @transform_3, window_bounds = array<i64: 16, 32>}]} {
    %c0 = arith.constant 0 : index
    %c0_0 = arith.constant 0 : index
    %0 = vector.load %arg2[%c0, %c0_0] : memref<16x32xf32, #tpu.memory_space<vmem>>, vector<16x32xf32>
    %c0_1 = arith.constant 0 : index
    %c0_2 = arith.constant 0 : index
    %1 = vector.load %arg3[%c0_1, %c0_2] : memref<32x32xf32, #tpu.memory_space<vmem>>, vector<32x32xf32>
    %cst = arith.constant dense<0.000000e+00> : vector<16x32xf32>
    %2 = tpu.matmul %0, %1, %cst {dimension_numbers = #tpu.dot_dimension_numbers<[1], [0], [0], [1], [0, 0, 1, 1], [], []>} : vector<16x32xf32>, vector<32x32xf32>, vector<16x32xf32> -> vector<16x32xf32>
    %c0_3 = arith.constant 0 : index
    %c0_4 = arith.constant 0 : index
    %3 = vector.load %arg4[%c0_3, %c0_4] : memref<1x32xf32, #tpu.memory_space<vmem>>, vector<1x32xf32>
    %4 = vector.broadcast %3 : vector<1x32xf32> to vector<16x32xf32>
    %5 = arith.addf %2, %4 : vector<16x32xf32>
    %c0_5 = arith.constant 0 : index
    %c0_6 = arith.constant 0 : index
    %6 = vector.load %arg5[%c0_5, %c0_6] : memref<16x32xf32, #tpu.memory_space<vmem>>, vector<16x32xf32>
    tpu.vector_store %arg5[%c0_5, %c0_6], %5 {strides = array<i32>} : memref<16x32xf32, #tpu.memory_space<vmem>>, vector<16x32xf32>,
    return
  }
  func.func @transform_0(%arg0: i32, %arg1: i32) -> (i32, i32) {
    %c0_i32 = arith.constant 0 : i32
    %c0_i32_0 = arith.constant 0 : i32
    return %arg0, %c0_i32 : i32, i32
  }
  func.func @transform_1(%arg0: i32, %arg1: i32) -> (i32, i32) {
    %c0_i32 = arith.constant 0 : i32
    %c0_i32_0 = arith.constant 0 : i32
    return %c0_i32, %arg1 : i32, i32
  }
  func.func @transform_2(%arg0: i32, %arg1: i32) -> (i32, i32) {
    %c0_i32 = arith.constant 0 : i32
    %c0_i32_0 = arith.constant 0 : i32
    return %c0_i32, %arg1 : i32, i32
  }
  func.func @transform_3(%arg0: i32, %arg1: i32) -> (i32, i32) {
    %c0_i32 = arith.constant 0 : i32
    return %arg0, %arg1 : i32, i32
  }
}

</mosaic_0001>

<llo_original>
// kernel: tpu_custom_call.1
$region0: #{tpu_custom_call.1}
  #allocation0 [shape = 'u32[]', space=smem, size = 0x4, offset = 0x4, fixed_abs, tag = 'smem constant byte address 0x4 - core index']
  #allocation1 [shape = 'u32[144,128]{1,0:T(1,128)}', space=vmem, size = 0x12000, scoped, tag = 'internal scratch']
  %s0 = inlined_call_operand.hbm [shape: f32[16,32], index: 0, kind: input, shape index: {}]
  %s1 = inlined_call_operand.hbm [shape: f32[32,32], index: 1, kind: input, shape index: {}]
  %s2 = inlined_call_operand.vmem [shape: f32[1,32], index: 2, kind: input, shape index: {}]
  %s3 = inlined_call_operand.hbm [shape: f32[16,32], index: 3, kind: output, shape index: {}]
  %s4 = sld [smem:[#allocation0]]
  $region30: #{tpu_custom_call.1} parent=0
    _
  %s6 = ssub.s32 1, %s4
  %s7 = scalar_select 0, %s6, %s4
  $region1: #{tpu_custom_call.1} parent=0
    #allocation2 [shape = 'u8[8192]{0}', space=vmem, size = 0x2000, scoped, tag = 'input window, operand 0, single buffered']
    #allocation3 [shape = 's32[1]{0}', space=sflag, size = 0x4, scoped, tag = 'scoped memory for tpu_custom_call.1']
    #allocation4 [shape = 's32[1]{0}', space=sflag, size = 0x4, scoped, tag = 'scoped memory for tpu_custom_call.1']
    #allocation5 [shape = 'u8[16384]{0}', space=vmem, size = 0x4000, scoped, tag = 'input window, operand 1, single buffered']
    #allocation6 [shape = 's32[1]{0}', space=sflag, size = 0x4, scoped, tag = 'scoped memory for tpu_custom_call.1']
    #allocation7 [shape = 'u8[8192]{0}', space=vmem, size = 0x2000, scoped, tag = 'output window, operand 0, single buffered']
    %8 = vsyncpa [#allocation3], 0
    %9 = vsyncpa [#allocation6], 0
    %10 = vsyncpa [#allocation4], 0
    // Predicated region
    $region2: #{tpu_custom_call.1} parent=1 // pred_check
      _
    $region3: #{tpu_custom_call.1} parent=1 // pred_check_branch
      %12 = sbr.rel (0) target = $region5
    $region4: #{tpu_custom_call.1} parent=1 // pred_region
      %s14 = ssub.s32 256, 256
      %15 = vsyncadd [#allocation3], %s14
      %s16 = sshll.u32 [#allocation2], 4
      %s17 = int_to_ptr.vmem [resolvable:$true] %s16
      %22 = dma.hbm_to_vmem [thread:$0]  %s0, 256, %s17, [#allocation3], 128, 128, 8
    $region5: #{tpu_custom_call.1} parent=1 // pred_fallthru
      _
    // Predicated region
    $region6: #{tpu_custom_call.1} parent=1 // pred_check
      _
    $region7: #{tpu_custom_call.1} parent=1 // pred_check_branch
      %24 = sbr.rel (0) target = $region9
    $region8: #{tpu_custom_call.1} parent=1 // pred_region
      %s26 = ssub.s32 512, 512
      %27 = vsyncadd [#allocation6], %s26
      %s28 = sshll.u32 [#allocation5], 4
      %s29 = int_to_ptr.vmem [resolvable:$true] %s28
      %34 = dma.hbm_to_vmem [thread:$0]  %s1, 512, %s29, [#allocation6], 128, 128, 8
    $region9: #{tpu_custom_call.1} parent=1 // pred_fallthru
      _
    // Predicated region
    $region10: #{tpu_custom_call.1} parent=1 // pred_check
      _
    $region11: #{tpu_custom_call.1} parent=1 // pred_check_branch
      %36 = sbr.rel (0) target = $region13
    $region12: #{tpu_custom_call.1} parent=1 // pred_region
      _
    $region13: #{tpu_custom_call.1} parent=1 // pred_fallthru
      _
    // Predicated region
    $region14: #{tpu_custom_call.1} parent=1 // pred_check
      _
    $region15: #{tpu_custom_call.1} parent=1 // pred_check_branch
      %38 = sbr.rel (0) target = $region17
    $region16: #{tpu_custom_call.1} parent=1 // pred_region
      %39 = dma.done [#allocation3], 256
    $region17: #{tpu_custom_call.1} parent=1 // pred_fallthru
      _
    // Predicated region
    $region18: #{tpu_custom_call.1} parent=1 // pred_check
      _
    $region19: #{tpu_custom_call.1} parent=1 // pred_check_branch
      %41 = sbr.rel (0) target = $region21
    $region20: #{tpu_custom_call.1} parent=1 // pred_region
      %42 = dma.done [#allocation6], 512
    $region21: #{tpu_custom_call.1} parent=1 // pred_fallthru
      _
    %v43 = vld [vmem:[#allocation2] sm:$0xff]
    %v44 = vld [vmem:[#allocation2 + $0x8] sm:$0xff]
    %v45 = vld [vmem:[#allocation5] sm:$0xff]
    %v46 = vld [vmem:[#allocation5 + $0x8] sm:$0xff]
    %v47 = vld [vmem:[#allocation5 + $0x10] sm:$0xff]
    %v48 = vld [vmem:[#allocation5 + $0x18] sm:$0xff]
    %v49 = vld [vmem:[%s2] sm:$0x1]
    %v51 = vlaneseq
    %v52 = vshrl.u32 %v51, 7
    %v53 = vsub.s32 0, %v52
    %v54 = vrot.slane %v49, %v53
    %vm56 = vcmask 261120
    %v58 = vsel %vm56, %v43, 0
    %v61 = vsel %vm56, %v44, 0
    %63 = vmatprep.subr.mxu0 0.0
    %64 = vmatpush1.msra.mxu0 0.0
    %65 = vmatprep.subr.mxu0 0.0
    %66 = vmatpush1.msra.mxu0 0.0
    %67 = vmatprep.subr.mxu0 0.0
    %68 = vmatpush1.msra.mxu0 0.0
    %69 = vmatprep.subr.mxu0 0.0
    %70 = vmatpush1.msra.mxu0 0.0
    %71 = vmatprep.subr.mxu0 0.0
    %72 = vmatpush1.msra.mxu0 0.0
    %73 = vmatprep.subr.mxu0 0.0
    %74 = vmatpush1.msra.mxu0 0.0
    %75 = vmatprep.subr.mxu0 0.0
    %76 = vmatpush1.msra.mxu0 0.0
    %77 = vmatprep.subr.mxu0 0.0
    %78 = vmatpush1.msra.mxu0 0.0
    %79 = vmatprep.subr.mxu0 0.0
    %80 = vmatpush1.msra.mxu0 0.0
    %81 = vmatprep.subr.mxu0 0.0
    %82 = vmatpush1.msra.mxu0 0.0
    %83 = vmatprep.subr.mxu0 0.0
    %84 = vmatpush1.msra.mxu0 0.0
    %85 = vmatprep.subr.mxu0 0.0
    %86 = vmatpush1.msra.mxu0 0.0
    %87 = vmatprep.subr.mxu0 0.0
    %88 = vmatpush1.msra.mxu0 %v48
    %89 = vmatprep.subr.mxu0 0.0
    %90 = vmatpush1.msra.mxu0 %v47
    %91 = vmatprep.subr.mxu0 0.0
    %92 = vmatpush1.msra.mxu0 %v46
    %93 = vmatprep.subr.mxu0 0.0
    %94 = vmatpush1.msra.mxu0 %v45
    %95 = vmatprep.subr.mxu0 0.0
    %96 = vmatpush2.msra.mxu0 0.0
    %97 = vmatprep.subr.mxu0 0.0
    %98 = vmatpush2.msra.mxu0 0.0
    %99 = vmatprep.subr.mxu0 0.0
    %100 = vmatpush2.msra.mxu0 0.0
    %101 = vmatprep.subr.mxu0 0.0
    %102 = vmatpush2.msra.mxu0 0.0
    %103 = vmatprep.subr.mxu0 0.0
    %104 = vmatpush2.msra.mxu0 0.0
    %105 = vmatprep.subr.mxu0 0.0
    %106 = vmatpush2.msra.mxu0 0.0
    %107 = vmatprep.subr.mxu0 0.0
    %108 = vmatpush2.msra.mxu0 0.0
    %109 = vmatprep.subr.mxu0 0.0
    %110 = vmatpush2.msra.mxu0 0.0
    %111 = vmatprep.subr.mxu0 0.0
    %112 = vmatpush2.msra.mxu0 0.0
    %113 = vmatprep.subr.mxu0 0.0
    %114 = vmatpush2.msra.mxu0 0.0
    %115 = vmatprep.subr.mxu0 0.0
    %116 = vmatpush2.msra.mxu0 0.0
    %117 = vmatprep.subr.mxu0 0.0
    %118 = vmatpush2.msra.mxu0 0.0
    %119 = vmatprep.subr.mxu0 0.0
    %120 = vmatpush2.msra.mxu0 0.0
    %121 = vmatprep.subr.mxu0 0.0
    %122 = vmatpush2.msra.mxu0 0.0
    %123 = vmatprep.subr.mxu0 0.0
    %124 = vmatpush2.msra.mxu0 0.0
    %125 = vmatprep.subr.mxu0 0.0
    %126 = vmatpush2.msra.mxu0 0.0
    %127 = vmatprep.mubr.f32.mxu0 0.0
    %128 = vmatmul.mubr.f32.gmra.mxu0 %v58
    %v129 = vpop.f32.mrf.mxu0
    %v130 = vadd.f32 %v54, %v129
    %v131 = vpop.f32.mrf.mxu0
    %132 = vmatprep.mubr.f32.mxu0 0.0
    %133 = vmatmul.mubr.f32.gmra.mxu0 %v61
    %v134 = vpop.f32.mrf.mxu0
    %v135 = vadd.f32 %v54, %v134
    %v136 = vpop.f32.mrf.mxu0
    %137 = vdwg.mxu0
    %138 = vst.msk [vmem:[#allocation7] sm:$0xff] %vm56, %v130
    %139 = vst.msk [vmem:[#allocation7 + $0x8] sm:$0xff] %vm56, %v135
    // Predicated region
    $region22: #{tpu_custom_call.1} parent=1 // pred_check
      _
    $region23: #{tpu_custom_call.1} parent=1 // pred_check_branch
      %141 = sbr.rel (0) target = $region25
    $region24: #{tpu_custom_call.1} parent=1 // pred_region
      %s143 = ssub.s32 256, 256
      %144 = vsyncadd [#allocation4], %s143
      %s145 = sshll.u32 [#allocation7], 4
      %s146 = int_to_ptr.vmem [resolvable:$true] %s145
      %151 = dma.vmem_to_hbm [thread:$0]  %s146, 256, %s3, [#allocation4], 128, 128, 8
    $region25: #{tpu_custom_call.1} parent=1 // pred_fallthru
      _
    // Predicated region
    $region26: #{tpu_custom_call.1} parent=1 // pred_check
      _
    $region27: #{tpu_custom_call.1} parent=1 // pred_check_branch
      %153 = sbr.rel (0) target = $region29
    $region28: #{tpu_custom_call.1} parent=1 // pred_region
      %154 = dma.done [#allocation4], 256
    $region29: #{tpu_custom_call.1} parent=1 // pred_fallthru
      _
    %155 = vsyncpa [#allocation3], 1
    %156 = vsyncpa [#allocation6], 1
    %157 = vsyncpa [#allocation4], 1

</llo_original>
